<compile_context>
chip_gen: v7x
topology: tpu7x:2x2x1
jax: 0.10.0
libtpu: 0.0.40
codegen_flags: <defaults>
</compile_context>

<pallas_src>
import jax
import jax.numpy as jnp
from jax import lax
from jax.experimental import pallas as pl
from jax.experimental.pallas import tpu as pltpu

EPS = 1e-5
# Explicit scoped-VMEM budget: generous for the tiles used here and safe on
# v5e / v6e / v7x.  Size to ~2x(double-buffered blocks)+scratch for big tiles.
VMEM_LIMIT = 32 * 1024 * 1024


# ----------------------------------------------------------------------------
# Kernel A: fused  y = PReLU( (x @ w) * scale + shift )   (conv bias in shift)
# ----------------------------------------------------------------------------
def _mm_affine_prelu_kernel(x_ref, w_ref, s_ref, t_ref, a_ref, o_ref):
    y = jnp.dot(x_ref[...], w_ref[...], preferred_element_type=jnp.float32)
    y = y * s_ref[...] + t_ref[...]
    o_ref[...] = jnp.where(y > 0, y, a_ref[...] * y)


def matmul_affine_prelu(x2d, w, scale, shift, alpha, *, tile_m=512):
    M, K = x2d.shape
    Nc = w.shape[1]
    tm = min(M, tile_m)                     # row tile; rows are independent
    row = lambda v: v.reshape(1, Nc).astype(jnp.float32)
    return pl.pallas_call(
        _mm_affine_prelu_kernel,
        out_shape=jax.ShapeDtypeStruct((M, Nc), jnp.float32),
        grid=(pl.cdiv(M, tm),),
        in_specs=[
            pl.BlockSpec((tm, K), lambda i: (i, 0)),
            pl.BlockSpec((K, Nc), lambda i: (0, 0)),
            pl.BlockSpec((1, Nc), lambda i: (0, 0)),
            pl.BlockSpec((1, Nc), lambda i: (0, 0)),
            pl.BlockSpec((1, Nc), lambda i: (0, 0)),
        ],
        out_specs=pl.BlockSpec((tm, Nc), lambda i: (i, 0)),
        compiler_params=pltpu.CompilerParams(
            dimension_semantics=("parallel",),
            vmem_limit_bytes=VMEM_LIMIT),
    )(x2d.astype(jnp.float32), w.astype(jnp.float32),
      row(scale), row(shift), row(alpha))


# ----------------------------------------------------------------------------
# Kernel B: 3x3 conv (split weight, padded VMEM scratch) + BN + PReLU
#           + residual add(up) + fused 1x1 conv + BN + PReLU
# ----------------------------------------------------------------------------
def _conv3_out_kernel(up_ref, br_ref, w3u_ref, w3b_ref, w1t_ref,
                      s3_ref, t3_ref, a3_ref, so_ref, to_ref, ao_ref,
                      o_ref, up_pad, br_pad):
    H2, W2, Cout = up_ref.shape
    Cbr = br_ref.shape[-1]
    HW = H2 * W2
    f32 = jnp.float32

    up_v = up_ref[...]                                   # (H2, W2, Cout)

    # 1-pixel zero halo + interior fill, VMEM-only (no HBM concat/pad).
    up_pad[0:1, :, :] = jnp.zeros((1, W2 + 2, Cout), f32)
    up_pad[H2 + 1:H2 + 2, :, :] = jnp.zeros((1, W2 + 2, Cout), f32)
    up_pad[:, 0:1, :] = jnp.zeros((H2 + 2, 1, Cout), f32)
    up_pad[:, W2 + 1:W2 + 2, :] = jnp.zeros((H2 + 2, 1, Cout), f32)
    up_pad[1:H2 + 1, 1:W2 + 1, :] = up_v

    br_pad[0:1, :, :] = jnp.zeros((1, W2 + 2, Cbr), f32)
    br_pad[H2 + 1:H2 + 2, :, :] = jnp.zeros((1, W2 + 2, Cbr), f32)
    br_pad[:, 0:1, :] = jnp.zeros((H2 + 2, 1, Cbr), f32)
    br_pad[:, W2 + 1:W2 + 2, :] = jnp.zeros((H2 + 2, 1, Cbr), f32)
    br_pad[1:H2 + 1, 1:W2 + 1, :] = br_ref[...]

    # 3x3 conv on the implicit concat([up, bridge]) = 9 shifted matmuls with
    # the conv weight split into its up-channels and bridge-channels parts.
    acc = jnp.zeros((HW, Cout), f32)
    for tap in range(9):                                 # static unroll
        ky, kx = tap // 3, tap % 3
        pu = up_pad[ky:ky + H2, kx:kx + W2, :].reshape(HW, Cout)
        pb = br_pad[ky:ky + H2, kx:kx + W2, :].reshape(HW, Cbr)
        acc = acc + jnp.dot(pu, w3u_ref[tap], preferred_element_type=f32)
        acc = acc + jnp.dot(pb, w3b_ref[tap], preferred_element_type=f32)

    y = acc * s3_ref[...] + t3_ref[...]                  # conv bias + BN folded
    y = jnp.where(y > 0, y, a3_ref[...] * y)             # PReLU
    y = y + up_v.reshape(HW, Cout)                       # residual add of `up`

    # Fused 1x1 conv + BN + PReLU, written channel-major (classes, H2*W2) so
    # the output store lane dim is H2*W2 (dense) rather than `classes`.
    out = lax.dot_general(w1t_ref[...], y, (((1,), (1,)), ((), ())),
                          preferred_element_type=f32)
    out = out * so_ref[...] + to_ref[...]
    o_ref[...] = jnp.where(out > 0, out, ao_ref[...] * out)


# ----------------------------------------------------------------------------
# Parameter handling
# ----------------------------------------------------------------------------
def bn_fold(bn):
    scale = bn['gamma'] / jnp.sqrt(bn['var'] + EPS)
    shift = bn['beta'] - bn['mean'] * scale
    return scale, shift


def init_params(key, cin, cbr, cout, classes):
    ks = jax.random.split(key, 20)
    ccat = cout + cbr
    nrm = lambda k, shape, s=0.1: s * jax.random.normal(k, shape, jnp.float32)
    bn = lambda k0, k1, k2, k3, c: dict(
        gamma=1.0 + nrm(k0, (c,)), beta=nrm(k1, (c,)),
        mean=nrm(k2, (c,)), var=1.0 + jnp.abs(nrm(k3, (c,))))
    return {
        # ConvTranspose2d(in, out, k=2, s=2): weight (Cin, Cout, 2, 2)
        'up_w': nrm(ks[0], (cin, cout, 2, 2)),
        'up_b': nrm(ks[1], (cout,)),
        'bn_up': bn(ks[2], ks[3], ks[4], ks[5], cout),
        'up_alpha': jnp.full((cout,), 0.25, jnp.float32),     # PReLU default
        # VNetConvBlock (layers=1): Conv2d(cout+cbr, cout, 3, pad=1)
        'conv3_w': nrm(ks[6], (cout, ccat, 3, 3)),
        'conv3_b': nrm(ks[7], (cout,)),
        'bn_cb': bn(ks[8], ks[9], ks[10], ks[11], cout),
        'cb_alpha': jnp.full((cout,), 0.25, jnp.float32),
        # Conv2d(cout, classes, 1)
        'conv1_w': nrm(ks[12], (classes, cout, 1, 1)),
        'conv1_b': nrm(ks[13], (classes,)),
        'bn_out': bn(ks[14], ks[15], ks[16], ks[17], classes),
        'out_alpha': jnp.full((classes,), 0.25, jnp.float32),
    }


# ----------------------------------------------------------------------------
# Forward pass (Pallas)
# ----------------------------------------------------------------------------
def vnet_out_block(x, bridge, p):
    x = x.astype(jnp.float32)
    bridge = bridge.astype(jnp.float32)
    N, Cin, H, W = x.shape
    Cout = p['up_w'].shape[1]
    Cbr = bridge.shape[1]
    classes = p['conv1_w'].shape[0]
    H2, W2 = 2 * H, 2 * W
    assert W2 % 8 == 0, "W2 must be a multiple of 8 for cheap in-kernel reshapes"

    # ---- Kernel A: ConvTranspose2d(k=2,s=2) + BN + PReLU as a tiled matmul ---
    x2d = jnp.transpose(x, (0, 2, 3, 1)).reshape(N * H * W, Cin)
    w_up = p['up_w'].reshape(Cin, Cout * 4)            # col = co*4 + ki*2 + kj
    s_up, t_up = bn_fold(p['bn_up'])
    up2d = matmul_affine_prelu(
        x2d, w_up,
        jnp.repeat(s_up, 4),
        jnp.repeat(p['up_b'] * s_up + t_up, 4),        # conv bias folded in
        jnp.repeat(p['up_alpha'], 4))
    # 2x2 de-interleave to NHWC upsampled (single XLA pass; see TODO above).
    up = up2d.reshape(N, H, W, Cout, 2, 2)
    up = jnp.transpose(up, (0, 1, 4, 2, 5, 3)).reshape(N, H2, W2, Cout)

    # ---- Kernel B: concat+Conv3x3+BN+PReLU+add(up)+Conv1x1+BN+PReLU (fused) --
    bridge_nhwc = jnp.transpose(bridge, (0, 2, 3, 1))
    w9 = jnp.transpose(p['conv3_w'], (2, 3, 1, 0)).reshape(9, Cout + Cbr, Cout)
    w3u, w3b = w9[:, :Cout, :], w9[:, Cout:, :]        # up-part / bridge-part
    s_cb, t_cb = bn_fold(p['bn_cb'])
    s_o, t_o = bn_fold(p['bn_out'])
    w1t = p['conv1_w'][:, :, 0, 0]                     # (classes, Cout)

    row = lambda v: v.reshape(1, -1).astype(jnp.float32)
    col = lambda v: v.reshape(-1, 1).astype(jnp.float32)

    out2 = pl.pallas_call(
        _conv3_out_kernel,
        out_shape=jax.ShapeDtypeStruct((N, classes, H2 * W2), jnp.float32),
        grid=(N,),
        in_specs=[
            pl.BlockSpec((None, H2, W2, Cout), lambda n: (n, 0, 0, 0)),
            pl.BlockSpec((None, H2, W2, Cbr), lambda n: (n, 0, 0, 0)),
            pl.BlockSpec((9, Cout, Cout), lambda n: (0, 0, 0)),
            pl.BlockSpec((9, Cbr, Cout), lambda n: (0, 0, 0)),
            pl.BlockSpec((classes, Cout), lambda n: (0, 0)),
            pl.BlockSpec((1, Cout), lambda n: (0, 0)),
            pl.BlockSpec((1, Cout), lambda n: (0, 0)),
            pl.BlockSpec((1, Cout), lambda n: (0, 0)),
            pl.BlockSpec((classes, 1), lambda n: (0, 0)),
            pl.BlockSpec((classes, 1), lambda n: (0, 0)),
            pl.BlockSpec((classes, 1), lambda n: (0, 0)),
        ],
        out_specs=pl.BlockSpec((None, classes, H2 * W2), lambda n: (n, 0, 0)),
        scratch_shapes=[
            pltpu.VMEM((H2 + 2, W2 + 2, Cout), jnp.float32),
            pltpu.VMEM((H2 + 2, W2 + 2, Cbr), jnp.float32),
        ],
        compiler_params=pltpu.CompilerParams(
            dimension_semantics=("parallel",),
            vmem_limit_bytes=VMEM_LIMIT),
    )(up, bridge_nhwc,
      w3u.astype(jnp.float32), w3b.astype(jnp.float32), w1t.astype(jnp.float32),
      row(s_cb), row(p['conv3_b'] * s_cb + t_cb), row(p['cb_alpha']),
      col(s_o), col(p['conv1_b'] * s_o + t_o), col(p['out_alpha']))

    # (N, classes, H2*W2) -> NCHW: row-major split of the minor dim, free.
    return out2.reshape(N, classes, H2, W2)


# ----------------------------------------------------------------------------
# Pure-JAX reference (independent path) for a correctness check
# ----------------------------------------------------------------------------
def _bn_eval(x_nchw, bn):
    scale = bn['gamma'] / jnp.sqrt(bn['var'] + EPS)
    shift = bn['beta'] - bn['mean'] * scale
    return x_nchw * scale[None, :, None, None] + shift[None, :, None, None]


def _prelu(x_nchw, alpha):
    return jnp.where(x_nchw > 0, x_nchw, alpha[None, :, None, None] * x_nchw)


def reference(x, bridge, p):
    N, Cin, H, W = x.shape
    Cout = p['up_w'].shape[1]
    up = jnp.einsum('nchw,cokl->nohkwl', x, p['up_w']).reshape(
        N, Cout, 2 * H, 2 * W)
    up = up + p['up_b'][None, :, None, None]
    up = _prelu(_bn_eval(up, p['bn_up']), p['up_alpha'])
    cat = jnp.concatenate([up, bridge], axis=1)
    out = lax.conv_general_dilated(
        cat, p['conv3_w'], (1, 1), 'SAME',
        dimension_numbers=('NCHW', 'OIHW', 'NCHW'))
    out = out + p['conv3_b'][None, :, None, None]
    out = _prelu(_bn_eval(out, p['bn_cb']), p['cb_alpha'])
    out = out + up
    out = jnp.einsum('nchw,oc->nohw', out, p['conv1_w'][:, :, 0, 0])
    out = out + p['conv1_b'][None, :, None, None]
    out = _prelu(_bn_eval(out, p['bn_out']), p['out_alpha'])
    return out


if __name__ == "__main__":
    key = jax.random.PRNGKey(0)
    in_channels, br_channels, out_channels, classes = 8, 4, 4, 3
    N, H, W = 2, 8, 8

    k1, k2, k3 = jax.random.split(key, 3)
    x = jax.random.normal(k1, (N, in_channels, H, W), jnp.float32)
    bridge = jax.random.normal(k2, (N, br_channels, 2 * H, 2 * W), jnp.float32)
    params = init_params(k3, in_channels, br_channels, out_channels, classes)

    out = vnet_out_block(x, bridge, params)
    out = jax.block_until_ready(out)

    assert out.shape == (N, classes, 2 * H, 2 * W), out.shape
    ref = reference(x, bridge, params)
    err = float(jnp.max(jnp.abs(out - ref)))
    assert err < 5e-3, f"max abs err {err}"
    print("KERNEL_OK")
</pallas_src>

<mosaic_0001>
module attributes {stable_mosaic.version = 11 : i64} {
  func.func @_mm_affine_prelu_kernel(%arg0: i32, %arg1: memref<128x8xf32, #tpu.memory_space<vmem>>, %arg2: memref<8x16xf32, #tpu.memory_space<vmem>>, %arg3: memref<1x16xf32, #tpu.memory_space<vmem>>, %arg4: memref<1x16xf32, #tpu.memory_space<vmem>>, %arg5: memref<1x16xf32, #tpu.memory_space<vmem>>, %arg6: memref<128x16xf32, #tpu.memory_space<vmem>>) attributes {dimension_semantics = [#tpu.dimension_semantics<parallel>], iteration_bounds = array<i64: 1>, scalar_prefetch = 0 : i64, scratch_operands = 0 : i64, tpu.core_type = #tpu.core_type<tc>, window_params = [{transform_indices = @transform_0, window_bounds = array<i64: 128, 8>}, {pipeline_mode = #tpu.pipeline_mode<synchronous>, transform_indices = @transform_1, window_bounds = array<i64: 8, 16>}, {pipeline_mode = #tpu.pipeline_mode<synchronous>, transform_indices = @transform_2, window_bounds = array<i64: 1, 16>}, {pipeline_mode = #tpu.pipeline_mode<synchronous>, transform_indices = @transform_3, window_bounds = array<i64: 1, 16>}, {pipeline_mode = #tpu.pipeline_mode<synchronous>, transform_indices = @transform_4, window_bounds = array<i64: 1, 16>}, {transform_indices = @transform_5, window_bounds = array<i64: 128, 16>}]} {
    %c0 = arith.constant 0 : index
    %c0_0 = arith.constant 0 : index
    %0 = vector.load %arg1[%c0, %c0_0] : memref<128x8xf32, #tpu.memory_space<vmem>>, vector<128x8xf32>
    %c0_1 = arith.constant 0 : index
    %c0_2 = arith.constant 0 : index
    %1 = vector.load %arg2[%c0_1, %c0_2] : memref<8x16xf32, #tpu.memory_space<vmem>>, vector<8x16xf32>
    %cst = arith.constant dense<0.000000e+00> : vector<128x16xf32>
    %2 = tpu.matmul %0, %1, %cst {dimension_numbers = #tpu.dot_dimension_numbers<[1], [0], [0], [1], [0, 0, 1, 1], [], []>} : vector<128x8xf32>, vector<8x16xf32>, vector<128x16xf32> -> vector<128x16xf32>
    %c0_3 = arith.constant 0 : index
    %c0_4 = arith.constant 0 : index
    %3 = vector.load %arg3[%c0_3, %c0_4] : memref<1x16xf32, #tpu.memory_space<vmem>>, vector<1x16xf32>
    %4 = vector.broadcast %3 : vector<1x16xf32> to vector<128x16xf32>
    %5 = arith.mulf %2, %4 : vector<128x16xf32>
    %c0_5 = arith.constant 0 : index
    %c0_6 = arith.constant 0 : index
    %6 = vector.load %arg4[%c0_5, %c0_6] : memref<1x16xf32, #tpu.memory_space<vmem>>, vector<1x16xf32>
    %7 = vector.broadcast %6 : vector<1x16xf32> to vector<128x16xf32>
    %8 = arith.addf %5, %7 : vector<128x16xf32>
    %cst_7 = arith.constant 0.000000e+00 : f32
    %9 = vector.broadcast %cst_7 : f32 to vector<128x16xf32>
    %10 = arith.cmpf ogt, %8, %9 : vector<128x16xf32>
    %c0_8 = arith.constant 0 : index
    %c0_9 = arith.constant 0 : index
    %11 = vector.load %arg5[%c0_8, %c0_9] : memref<1x16xf32, #tpu.memory_space<vmem>>, vector<1x16xf32>
    %12 = vector.broadcast %11 : vector<1x16xf32> to vector<128x16xf32>
    %13 = arith.mulf %12, %8 : vector<128x16xf32>
    %14 = arith.select %10, %8, %13 : vector<128x16xi1>, vector<128x16xf32>
    %c0_10 = arith.constant 0 : index
    %c0_11 = arith.constant 0 : index
    %15 = vector.load %arg6[%c0_10, %c0_11] : memref<128x16xf32, #tpu.memory_space<vmem>>, vector<128x16xf32>
    tpu.vector_store %arg6[%c0_10, %c0_11], %14 {strides = array<i32>} : memref<128x16xf32, #tpu.memory_space<vmem>>, vector<128x16xf32>,
    return
  }
  func.func @transform_0(%arg0: i32) -> (i32, i32) {
    %c0_i32 = arith.constant 0 : i32
    %c0_i32_0 = arith.constant 0 : i32
    return %arg0, %c0_i32 : i32, i32
  }
  func.func @transform_1(%arg0: i32) -> (i32, i32) {
    %c0_i32 = arith.constant 0 : i32
    %c0_i32_0 = arith.constant 0 : i32
    %c0_i32_1 = arith.constant 0 : i32
    return %c0_i32, %c0_i32_0 : i32, i32
  }
  func.func @transform_2(%arg0: i32) -> (i32, i32) {
    %c0_i32 = arith.constant 0 : i32
    %c0_i32_0 = arith.constant 0 : i32
    %c0_i32_1 = arith.constant 0 : i32
    return %c0_i32, %c0_i32_0 : i32, i32
  }
  func.func @transform_3(%arg0: i32) -> (i32, i32) {
    %c0_i32 = arith.constant 0 : i32
    %c0_i32_0 = arith.constant 0 : i32
    %c0_i32_1 = arith.constant 0 : i32
    return %c0_i32, %c0_i32_0 : i32, i32
  }
  func.func @transform_4(%arg0: i32) -> (i32, i32) {
    %c0_i32 = arith.constant 0 : i32
    %c0_i32_0 = arith.constant 0 : i32
    %c0_i32_1 = arith.constant 0 : i32
    return %c0_i32, %c0_i32_0 : i32, i32
  }
  func.func @transform_5(%arg0: i32) -> (i32, i32) {
    %c0_i32 = arith.constant 0 : i32
    %c0_i32_0 = arith.constant 0 : i32
    return %arg0, %c0_i32 : i32, i32
  }
}

</mosaic_0001>

<llo_original>
// kernel: tpu_custom_call.1
$region0: #{tpu_custom_call.1}
  #allocation0 [shape = 'u32[]', space=smem, size = 0x4, offset = 0x4, fixed_abs, tag = 'smem constant byte address 0x4 - core index']
  #allocation1 [shape = 'u32[144,128]{1,0:T(1,128)}', space=vmem, size = 0x12000, scoped, tag = 'internal scratch']
  %s0 = inlined_call_operand.vmem [shape: f32[128,8], index: 0, kind: input, shape index: {}]
  %s1 = inlined_call_operand.vmem [shape: f32[8,16], index: 1, kind: input, shape index: {}]
  %s2 = inlined_call_operand.vmem [shape: f32[1,16], index: 2, kind: input, shape index: {}]
  %s3 = inlined_call_operand.vmem [shape: f32[1,16], index: 3, kind: input, shape index: {}]
  %s4 = inlined_call_operand.vmem [shape: f32[1,16], index: 4, kind: input, shape index: {}]
  %s5 = inlined_call_operand.vmem [shape: f32[128,16], index: 5, kind: output, shape index: {}]
  %s6 = sld [smem:[#allocation0]]
  $region30: #{tpu_custom_call.1} parent=0
    _
  %s8 = ssub.s32 1, %s6
  %s9 = scalar_select 0, %s8, %s6
  // Predicated region
  $region2: #{tpu_custom_call.1} parent=0 // pred_check
    _
  $region3: #{tpu_custom_call.1} parent=0 // pred_check_branch
    %11 = sbr.rel (0) target = $region5
  $region4: #{tpu_custom_call.1} parent=0 // pred_region
    _
  $region5: #{tpu_custom_call.1} parent=0 // pred_fallthru
    _
  // Predicated region
  $region6: #{tpu_custom_call.1} parent=0 // pred_check
    _
  $region7: #{tpu_custom_call.1} parent=0 // pred_check_branch
    %13 = sbr.rel (0) target = $region9
  $region8: #{tpu_custom_call.1} parent=0 // pred_region
    _
  $region9: #{tpu_custom_call.1} parent=0 // pred_fallthru
    _
  // Predicated region
  $region10: #{tpu_custom_call.1} parent=0 // pred_check
    _
  $region11: #{tpu_custom_call.1} parent=0 // pred_check_branch
    %15 = sbr.rel (0) target = $region13
  $region12: #{tpu_custom_call.1} parent=0 // pred_region
    _
  $region13: #{tpu_custom_call.1} parent=0 // pred_fallthru
    _
  // Predicated region
  $region14: #{tpu_custom_call.1} parent=0 // pred_check
    _
  $region15: #{tpu_custom_call.1} parent=0 // pred_check_branch
    %17 = sbr.rel (0) target = $region17
  $region16: #{tpu_custom_call.1} parent=0 // pred_region
    _
  $region17: #{tpu_custom_call.1} parent=0 // pred_fallthru
    _
  // Predicated region
  $region18: #{tpu_custom_call.1} parent=0 // pred_check
    _
  $region19: #{tpu_custom_call.1} parent=0 // pred_check_branch
    %19 = sbr.rel (0) target = $region21
  $region20: #{tpu_custom_call.1} parent=0 // pred_region
    _
  $region21: #{tpu_custom_call.1} parent=0 // pred_fallthru
    _
  %v20 = vld [vmem:[%s0] sm:$0xff]
  %v21 = vld [vmem:[%s0 + $0x8] sm:$0xff]
  %v22 = vld [vmem:[%s0 + $0x10] sm:$0xff]
  %v23 = vld [vmem:[%s0 + $0x18] sm:$0xff]
  %v24 = vld [vmem:[%s0 + $0x20] sm:$0xff]
  %v25 = vld [vmem:[%s0 + $0x28] sm:$0xff]
  %v26 = vld [vmem:[%s0 + $0x30] sm:$0xff]
  %v27 = vld [vmem:[%s0 + $0x38] sm:$0xff]
  %v28 = vld [vmem:[%s0 + $0x40] sm:$0xff]
  %v29 = vld [vmem:[%s0 + $0x48] sm:$0xff]
  %v30 = vld [vmem:[%s0 + $0x50] sm:$0xff]
  %v31 = vld [vmem:[%s0 + $0x58] sm:$0xff]
  %v32 = vld [vmem:[%s0 + $0x60] sm:$0xff]
  %v33 = vld [vmem:[%s0 + $0x68] sm:$0xff]
  %v34 = vld [vmem:[%s0 + $0x70] sm:$0xff]
  %v35 = vld [vmem:[%s0 + $0x78] sm:$0xff]
  %v36 = vld [vmem:[%s1] sm:$0xff]
  %vm37 = vcmask 64512
  %v39 = vsel %vm37, %v20, 0
  %v42 = vsel %vm37, %v21, 0
  %v45 = vsel %vm37, %v22, 0
  %v48 = vsel %vm37, %v23, 0
  %v51 = vsel %vm37, %v24, 0
  %v54 = vsel %vm37, %v25, 0
  %v57 = vsel %vm37, %v26, 0
  %v60 = vsel %vm37, %v27, 0
  %v63 = vsel %vm37, %v28, 0
  %v66 = vsel %vm37, %v29, 0
  %v69 = vsel %vm37, %v30, 0
  %v72 = vsel %vm37, %v31, 0
  %v75 = vsel %vm37, %v32, 0
  %v78 = vsel %vm37, %v33, 0
  %v81 = vsel %vm37, %v34, 0
  %v84 = vsel %vm37, %v35, 0
  %86 = vmatprep.subr.mxu0 0.0
  %87 = vmatpush1.msra.mxu0 %v36
  %88 = vmatprep.subr.mxu0 0.0
  %89 = vmatpush1.msra.mxu0 0.0
  %90 = vmatprep.subr.mxu0 0.0
  %91 = vmatpush1.msra.mxu0 0.0
  %92 = vmatprep.subr.mxu0 0.0
  %93 = vmatpush1.msra.mxu0 0.0
  %94 = vmatprep.subr.mxu0 0.0
  %95 = vmatpush1.msra.mxu0 0.0
  %96 = vmatprep.subr.mxu0 0.0
  %97 = vmatpush1.msra.mxu0 0.0
  %98 = vmatprep.subr.mxu0 0.0
  %99 = vmatpush1.msra.mxu0 0.0
  %100 = vmatprep.subr.mxu0 0.0
  %101 = vmatpush1.msra.mxu0 0.0
  %102 = vmatprep.subr.mxu0 0.0
  %103 = vmatpush1.msra.mxu0 0.0
  %104 = vmatprep.subr.mxu0 0.0
  %105 = vmatpush1.msra.mxu0 0.0
  %106 = vmatprep.subr.mxu0 0.0
  %107 = vmatpush1.msra.mxu0 0.0
  %108 = vmatprep.subr.mxu0 0.0
  %109 = vmatpush1.msra.mxu0 0.0
  %110 = vmatprep.subr.mxu0 0.0
  %111 = vmatpush1.msra.mxu0 0.0
  %112 = vmatprep.subr.mxu0 0.0
  %113 = vmatpush1.msra.mxu0 0.0
  %114 = vmatprep.subr.mxu0 0.0
  %115 = vmatpush1.msra.mxu0 0.0
  %116 = vmatprep.subr.mxu0 0.0
  %117 = vmatpush1.msra.mxu0 0.0
  %118 = vmatprep.subr.mxu0 0.0
  %119 = vmatpush1.msra.mxu0 0.0
  %120 = vmatprep.subr.mxu0 0.0
  %121 = vmatpush1.msra.mxu0 0.0
  %122 = vmatprep.subr.mxu0 0.0
  %123 = vmatpush1.msra.mxu0 0.0
  %124 = vmatprep.subr.mxu0 0.0
  %125 = vmatpush1.msra.mxu0 0.0
  %126 = vmatprep.subr.mxu0 0.0
  %127 = vmatpush1.msra.mxu0 0.0
  %128 = vmatprep.subr.mxu0 0.0
  %129 = vmatpush1.msra.mxu0 0.0
  %130 = vmatprep.subr.mxu0 0.0
  %131 = vmatpush1.msra.mxu0 0.0
  %132 = vmatprep.subr.mxu0 0.0
  %133 = vmatpush1.msra.mxu0 0.0
  %134 = vmatprep.subr.mxu0 0.0
  %135 = vmatpush1.msra.mxu0 0.0
  %136 = vmatprep.subr.mxu0 0.0
  %137 = vmatpush1.msra.mxu0 0.0
  %138 = vmatprep.subr.mxu0 0.0
  %139 = vmatpush1.msra.mxu0 0.0
  %140 = vmatprep.subr.mxu0 0.0
  %141 = vmatpush1.msra.mxu0 0.0
  %142 = vmatprep.subr.mxu0 0.0
  %143 = vmatpush1.msra.mxu0 0.0
  %144 = vmatprep.subr.mxu0 0.0
  %145 = vmatpush1.msra.mxu0 0.0
  %146 = vmatprep.subr.mxu0 0.0
  %147 = vmatpush1.msra.mxu0 0.0
  %148 = vmatprep.subr.mxu0 0.0
  %149 = vmatpush1.msra.mxu0 0.0
  %150 = vmatprep.mubr.f32.mxu0 0.0
  %151 = vmatmul.mubr.f32.gmra.mrb[0].mxu0 %v39
  %v152 = vpop.f32.mrb[0].mxu0
  %v153 = vadd.f32 0.0, %v152
  %v154 = vpop.f32.mrb[0].mxu0
  %155 = vmatprep.mubr.f32.mxu0 0.0
  %156 = vmatmul.mubr.f32.gmra.mrb[0].mxu0 %v42
  %v157 = vpop.f32.mrb[0].mxu0
  %v158 = vadd.f32 0.0, %v157
  %v159 = vpop.f32.mrb[0].mxu0
  %160 = vmatprep.mubr.f32.mxu0 0.0
  %161 = vmatmul.mubr.f32.gmra.mrb[0].mxu0 %v45
  %v162 = vpop.f32.mrb[0].mxu0
  %v163 = vadd.f32 0.0, %v162
  %v164 = vpop.f32.mrb[0].mxu0
  %165 = vmatprep.mubr.f32.mxu0 0.0
  %166 = vmatmul.mubr.f32.gmra.mrb[0].mxu0 %v48
  %v167 = vpop.f32.mrb[0].mxu0
  %v168 = vadd.f32 0.0, %v167
  %v169 = vpop.f32.mrb[0].mxu0
  %170 = vmatprep.mubr.f32.mxu0 0.0
  %171 = vmatmul.mubr.f32.gmra.mrb[0].mxu0 %v51
  %v172 = vpop.f32.mrb[0].mxu0
  %v173 = vadd.f32 0.0, %v172
  %v174 = vpop.f32.mrb[0].mxu0
  %175 = vmatprep.mubr.f32.mxu0 0.0
  %176 = vmatmul.mubr.f32.gmra.mrb[0].mxu0 %v54
  %v177 = vpop.f32.mrb[0].mxu0
  %v178 = vadd.f32 0.0, %v177
  %v179 = vpop.f32.mrb[0].mxu0
  %180 = vmatprep.mubr.f32.mxu0 0.0
  %181 = vmatmul.mubr.f32.gmra.mrb[0].mxu0 %v57
  %v182 = vpop.f32.mrb[0].mxu0
  %v183 = vadd.f32 0.0, %v182
  %v184 = vpop.f32.mrb[0].mxu0
  %185 = vmatprep.mubr.f32.mxu0 0.0
  %186 = vmatmul.mubr.f32.gmra.mrb[0].mxu0 %v60
  %v187 = vpop.f32.mrb[0].mxu0
  %v188 = vadd.f32 0.0, %v187
  %v189 = vpop.f32.mrb[0].mxu0
  %190 = vmatprep.mubr.f32.mxu0 0.0
  %191 = vmatmul.mubr.f32.gmra.mrb[0].mxu0 %v63
  %v192 = vpop.f32.mrb[0].mxu0
  %v193 = vadd.f32 0.0, %v192
  %v194 = vpop.f32.mrb[0].mxu0
  %195 = vmatprep.mubr.f32.mxu0 0.0
  %196 = vmatmul.mubr.f32.gmra.mrb[0].mxu0 %v66
  %v197 = vpop.f32.mrb[0].mxu0
  %v198 = vadd.f32 0.0, %v197
  %v199 = vpop.f32.mrb[0].mxu0
  %200 = vmatprep.mubr.f32.mxu0 0.0
  %201 = vmatmul.mubr.f32.gmra.mrb[0].mxu0 %v69
  %v202 = vpop.f32.mrb[0].mxu0
  %v203 = vadd.f32 0.0, %v202
  %v204 = vpop.f32.mrb[0].mxu0
  %205 = vmatprep.mubr.f32.mxu0 0.0
  %206 = vmatmul.mubr.f32.gmra.mrb[0].mxu0 %v72
  %v207 = vpop.f32.mrb[0].mxu0
  %v208 = vadd.f32 0.0, %v207
  %v209 = vpop.f32.mrb[0].mxu0
  %210 = vmatprep.mubr.f32.mxu0 0.0
  %211 = vmatmul.mubr.f32.gmra.mrb[0].mxu0 %v75
  %v212 = vpop.f32.mrb[0].mxu0
  %v213 = vadd.f32 0.0, %v212
  %v214 = vpop.f32.mrb[0].mxu0
  %215 = vmatprep.mubr.f32.mxu0 0.0
  %216 = vmatmul.mubr.f32.gmra.mrb[0].mxu0 %v78
  %v217 = vpop.f32.mrb[0].mxu0
  %v218 = vadd.f32 0.0, %v217
  %v219 = vpop.f32.mrb[0].mxu0
  %220 = vmatprep.mubr.f32.mxu0 0.0
  %221 = vmatmul.mubr.f32.gmra.mrb[0].mxu0 %v81
  %v222 = vpop.f32.mrb[0].mxu0
  %v223 = vadd.f32 0.0, %v222
  %v224 = vpop.f32.mrb[0].mxu0
  %225 = vmatprep.mubr.f32.mxu0 0.0
  %226 = vmatmul.mubr.f32.gmra.mrb[0].mxu0 %v84
  %v227 = vpop.f32.mrb[0].mxu0
  %v228 = vadd.f32 0.0, %v227
  %v229 = vpop.f32.mrb[0].mxu0
  %230 = vdwg.mxu0
  %v231 = vld [vmem:[%s2] sm:$0x1]
  %v233 = vlaneseq
  %v234 = vshrl.u32 %v233, 7
  %v235 = vsub.s32 0, %v234
  %v236 = vrot.slane %v231, %v235
  %v238 = vmul.f32 %v153, %v236
  %v239 = vmul.f32 %v158, %v236
  %v240 = vmul.f32 %v163, %v236
  %v241 = vmul.f32 %v168, %v236
  %v242 = vmul.f32 %v173, %v236
  %v243 = vmul.f32 %v178, %v236
  %v244 = vmul.f32 %v183, %v236
  %v245 = vmul.f32 %v188, %v236
  %v246 = vmul.f32 %v193, %v236
  %v247 = vmul.f32 %v198, %v236
  %v248 = vmul.f32 %v203, %v236
  %v249 = vmul.f32 %v208, %v236
  %v250 = vmul.f32 %v213, %v236
  %v251 = vmul.f32 %v218, %v236
  %v252 = vmul.f32 %v223, %v236
  %v253 = vmul.f32 %v228, %v236
  %v254 = vld [vmem:[%s3] sm:$0x1]
  %v256 = vlaneseq
  %v257 = vshrl.u32 %v256, 7
  %v258 = vsub.s32 0, %v257
  %v259 = vrot.slane %v254, %v258
  %v261 = vadd.f32 %v238, %v259
  %v262 = vadd.f32 %v239, %v259
  %v263 = vadd.f32 %v240, %v259
  %v264 = vadd.f32 %v241, %v259
  %v265 = vadd.f32 %v242, %v259
  %v266 = vadd.f32 %v243, %v259
  %v267 = vadd.f32 %v244, %v259
  %v268 = vadd.f32 %v245, %v259
  %v269 = vadd.f32 %v246, %v259
  %v270 = vadd.f32 %v247, %v259
  %v271 = vadd.f32 %v248, %v259
  %v272 = vadd.f32 %v249, %v259
  %v273 = vadd.f32 %v250, %v259
  %v274 = vadd.f32 %v251, %v259
  %v275 = vadd.f32 %v252, %v259
  %v276 = vadd.f32 %v253, %v259
  %vm277 = vcmp.gt.f32.partialorder %v261, 0.0
  %vm278 = vcmp.gt.f32.partialorder %v262, 0.0
  %vm279 = vcmp.gt.f32.partialorder %v263, 0.0
  %vm280 = vcmp.gt.f32.partialorder %v264, 0.0
  %vm281 = vcmp.gt.f32.partialorder %v265, 0.0
  %vm282 = vcmp.gt.f32.partialorder %v266, 0.0
  %vm283 = vcmp.gt.f32.partialorder %v267, 0.0
  %vm284 = vcmp.gt.f32.partialorder %v268, 0.0
  %vm285 = vcmp.gt.f32.partialorder %v269, 0.0
  %vm286 = vcmp.gt.f32.partialorder %v270, 0.0
  %vm287 = vcmp.gt.f32.partialorder %v271, 0.0
  %vm288 = vcmp.gt.f32.partialorder %v272, 0.0
  %vm289 = vcmp.gt.f32.partialorder %v273, 0.0
  %vm290 = vcmp.gt.f32.partialorder %v274, 0.0
  %vm291 = vcmp.gt.f32.partialorder %v275, 0.0
  %vm292 = vcmp.gt.f32.partialorder %v276, 0.0
  %v293 = vld [vmem:[%s4] sm:$0x1]
  %v295 = vlaneseq
  %v296 = vshrl.u32 %v295, 7
  %v297 = vsub.s32 0, %v296
  %v298 = vrot.slane %v293, %v297
  %v300 = vmul.f32 %v298, %v261
  %v301 = vmul.f32 %v298, %v262
  %v302 = vmul.f32 %v298, %v263
  %v303 = vmul.f32 %v298, %v264
  %v304 = vmul.f32 %v298, %v265
  %v305 = vmul.f32 %v298, %v266
  %v306 = vmul.f32 %v298, %v267
  %v307 = vmul.f32 %v298, %v268
  %v308 = vmul.f32 %v298, %v269
  %v309 = vmul.f32 %v298, %v270
  %v310 = vmul.f32 %v298, %v271
  %v311 = vmul.f32 %v298, %v272
  %v312 = vmul.f32 %v298, %v273
  %v313 = vmul.f32 %v298, %v274
  %v314 = vmul.f32 %v298, %v275
  %v315 = vmul.f32 %v298, %v276
  %v316 = vsel %vm277, %v261, %v300
  %v317 = vsel %vm278, %v262, %v301
  %v318 = vsel %vm279, %v263, %v302
  %v319 = vsel %vm280, %v264, %v303
  %v320 = vsel %vm281, %v265, %v304
  %v321 = vsel %vm282, %v266, %v305
  %v322 = vsel %vm283, %v267, %v306
  %v323 = vsel %vm284, %v268, %v307
  %v324 = vsel %vm285, %v269, %v308
  %v325 = vsel %vm286, %v270, %v309
  %v326 = vsel %vm287, %v271, %v310
  %v327 = vsel %vm288, %v272, %v311
  %v328 = vsel %vm289, %v273, %v312
  %v329 = vsel %vm290, %v274, %v313
  %v330 = vsel %vm291, %v275, %v314
  %v331 = vsel %vm292, %v276, %v315
  %vm332 = vcmask 130048
  %333 = vst.msk [vmem:[%s5] sm:$0xff] %vm332, %v316
  %334 = vst.msk [vmem:[%s5 + $0x8] sm:$0xff] %vm332, %v317
  %335 = vst.msk [vmem:[%s5 + $0x10] sm:$0xff] %vm332, %v318
  %336 = vst.msk [vmem:[%s5 + $0x18] sm:$0xff] %vm332, %v319
  %337 = vst.msk [vmem:[%s5 + $0x20] sm:$0xff] %vm332, %v320
  %338 = vst.msk [vmem:[%s5 + $0x28] sm:$0xff] %vm332, %v321
  %339 = vst.msk [vmem:[%s5 + $0x30] sm:$0xff] %vm332, %v322
  %340 = vst.msk [vmem:[%s5 + $0x38] sm:$0xff] %vm332, %v323
  %341 = vst.msk [vmem:[%s5 + $0x40] sm:$0xff] %vm332, %v324
  %342 = vst.msk [vmem:[%s5 + $0x48] sm:$0xff] %vm332, %v325
  %343 = vst.msk [vmem:[%s5 + $0x50] sm:$0xff] %vm332, %v326
  %344 = vst.msk [vmem:[%s5 + $0x58] sm:$0xff] %vm332, %v327
  %345 = vst.msk [vmem:[%s5 + $0x60] sm:$0xff] %vm332, %v328
  %346 = vst.msk [vmem:[%s5 + $0x68] sm:$0xff] %vm332, %v329
  %347 = vst.msk [vmem:[%s5 + $0x70] sm:$0xff] %vm332, %v330
  %348 = vst.msk [vmem:[%s5 + $0x78] sm:$0xff] %vm332, %v331
  // Predicated region
  $region22: #{tpu_custom_call.1} parent=0 // pred_check
    _
  $region23: #{tpu_custom_call.1} parent=0 // pred_check_branch
    %350 = sbr.rel (0) target = $region25
  $region24: #{tpu_custom_call.1} parent=0 // pred_region
    _
  $region25: #{tpu_custom_call.1} parent=0 // pred_fallthru
    _
  // Predicated region
  $region26: #{tpu_custom_call.1} parent=0 // pred_check
    _
  $region27: #{tpu_custom_call.1} parent=0 // pred_check_branch
    %352 = sbr.rel (0) target = $region29
  $region28: #{tpu_custom_call.1} parent=0 // pred_region
    _
  $region29: #{tpu_custom_call.1} parent=0 // pred_fallthru
    _

</llo_original>
